<compile_context>
chip_gen: v7x
topology: tpu7x:2x2x1
jax: 0.10.0
libtpu: 0.0.40
codegen_flags: <defaults>
</compile_context>

<pallas_src>
import jax
import jax.numpy as jnp
from jax.experimental import pallas as pl
from jax.experimental.pallas import tpu as pltpu

_MB = 1024 * 1024


def _round_up(x, m):
    return ((x + m - 1) // m) * m


def _nll_kernel(logits_ref, tm_ref, out_ref):
    """One grid step: a (TT, V) block of logits for one (batch, outer-time) cell.

    logits_ref: (TT, V)         native-dtype log-probabilities
    tm_ref:     (TT, 2)  f32    col 0 = target class (as float, exact < 2^24)
                                col 1 = mask weight (0 for padded/dropped rows)
    out_ref:    (1, 1, 8, 128)  f32 per-(batch, outer-time) partial-sum slab
    """
    ti = pl.program_id(2)

    @pl.when(ti == 0)
    def _():
        out_ref[...] = jnp.zeros_like(out_ref)

    x = logits_ref[...]                                    # (TT, V) native dtype
    tm = tm_ref[...]                                       # (TT, 2) f32
    tgt = tm[:, 0:1].astype(jnp.int32)                     # (TT, 1)
    msk = tm[:, 1:2]                                       # (TT, 1)

    # Gather the target log-prob per row via where-select in the NATIVE dtype
    # (no whole-block upcast).  At most one element per row survives, so the
    # reduction is exact in any float format; the select form (not a one-hot
    # multiply) is robust to -inf logits and garbage edge-block rows.
    ids = jax.lax.broadcasted_iota(jnp.int32, x.shape, 1)
    picked = jnp.sum(jnp.where(ids == tgt, x, jnp.zeros((), x.dtype)),
                     axis=1, keepdims=True)
    picked = picked.astype(jnp.float32)                    # (TT, 1)

    # Rows with mask == 0 (padding, dropped last step, overrun, duplicated
    # clamped blocks) contribute 0 even if the gathered value is NaN/Inf.
    contrib = jnp.where(msk != 0.0, picked * msk, 0.0)     # (TT, 1)

    # Accumulate into the resident per-(batch, outer-time) output slab.
    out_ref[...] += jnp.sum(contrib)


def language_model_criterion(logits, targets, masks, *, tile_time=None):
    """JAX/Pallas equivalent of LanguageModelCriterion.forward."""
    N, T, V = logits.shape
    T_eff = T - 1                                    # logits[:, :-1]
    if T_eff <= 0:
        return jnp.float32(0.0)

    dtype_bytes = jnp.dtype(logits.dtype).itemsize
    sub = 16 if dtype_bytes == 2 else (32 if dtype_bytes == 1 else 8)

    # Generation-aware scoped-VMEM budget: leave >=16 MiB physical headroom,
    # never ask for more than 64 MiB (v5e/v6e: 128 MiB -> 64; v7x: 64 -> 48).
    try:
        vmem_cap = pltpu.get_tpu_info().vmem_capacity_bytes
    except Exception:
        vmem_cap = 128 * _MB
    vmem_limit = int(max(32 * _MB, min(vmem_cap - 16 * _MB, 64 * _MB)))

    # Time tile: as many rows as fit a ~60%-of-scoped-VMEM working set.
    # Per logits element while a block is in flight:
    #   2 x native (double-buffered input) + 1 x native (select result)
    #   + ~12 B (i32 iota + compare-mask temporaries).
    if tile_time is None:
        per_elem = 3 * dtype_bytes + 12
        usable = (6 * vmem_limit) // 10
        tile_time = max(sub, usable // (V * per_elem))
    TT = min(_round_up(T_eff, sub), _round_up(int(tile_time), sub))

    n_tb = pl.cdiv(T_eff, TT)                 # time blocks actually needed
    # v7x has 2 TensorCores: when the batch axis alone cannot feed both,
    # split time into an extra *parallel* outer axis (no-op on v5e/v6e).
    n_outer = 1 if N >= 2 else min(2, n_tb)
    n_inner = pl.cdiv(n_tb, n_outer)
    total_tb = n_outer * n_inner
    Tp = total_tb * TT
    last_blk = n_tb - 1                       # clamp duplicated blocks here

    # Shifted targets + masks packed into ONE tiny f32 side input (one DMA
    # descriptor instead of two).  Zero mask padding covers the dropped last
    # time step, edge-block overrun rows and duplicated (clamped) blocks.
    tg = targets[:, 1:T].astype(jnp.float32)  # class id as f32 (exact V < 2^24)
    mk = masks[:, 1:T].astype(jnp.float32)
    pad = Tp - T_eff
    if pad:
        tg = jnp.pad(tg, ((0, 0), (0, pad)))
        mk = jnp.pad(mk, ((0, 0), (0, pad)))
    tm = jnp.stack([tg, mk], axis=-1).reshape(N * Tp, 2)

    grid = (N, n_outer, n_inner)

    cost = pl.CostEstimate(
        flops=2 * N * T_eff * V,
        transcendentals=0,
        bytes_accessed=int(N * T * V * dtype_bytes + N * Tp * 8
                           + N * n_outer * 8 * 128 * 4),
    )

    partial = pl.pallas_call(
        _nll_kernel,
        out_shape=jax.ShapeDtypeStruct((N, n_outer, 8, 128), jnp.float32),
        grid_spec=pltpu.PrefetchScalarGridSpec(
            num_scalar_prefetch=0,
            grid=grid,
            in_specs=[
                # logits read once, in place, in their native dtype/layout.
                pl.BlockSpec(
                    (pl.Squeezed(), TT, V),
                    lambda n, to, ti: (n,
                                       jnp.minimum(to * n_inner + ti, last_blk),
                                       0)),
                # packed (target, mask) rows; duplicated blocks map into the
                # zero-padded tail, so their contribution is exactly 0.
                pl.BlockSpec(
                    (TT, 2),
                    lambda n, to, ti: (n * total_tb + to * n_inner + ti, 0)),
            ],
            out_specs=pl.BlockSpec((1, 1, 8, 128),
                                   lambda n, to, ti: (n, to, 0, 0)),
        ),
        compiler_params=pltpu.CompilerParams(
            dimension_semantics=("parallel", "parallel", "arbitrary"),
            vmem_limit_bytes=vmem_limit,
        ),
        cost_estimate=cost,
    )(logits, tm)

    # Negation and 1/batch_size scaling hoisted out of the kernel.
    # TODO(synk): some LanguageModelCriterion variants normalize by sum(mask)
    # instead of batch size; this matches the given module exactly (/ N).
    return -jnp.sum(partial[:, :, 0, 0]) / N


def _reference(logits, targets, masks):
    """Pure-JAX reference matching the PyTorch module exactly."""
    N, T, _ = logits.shape
    lg = logits[:, :-1, :].astype(jnp.float32)
    tg = targets[:, 1:T].astype(jnp.int32)
    mk = masks[:, 1:T].astype(jnp.float32)
    picked = jnp.take_along_axis(lg, tg[..., None], axis=-1)[..., 0]
    return jnp.sum(-picked * mk) / N


if __name__ == "__main__":
    key = jax.random.PRNGKey(0)
    k1, k2, k3, k4, k5, k6 = jax.random.split(key, 6)

    # Test 1: small f32, batch-parallel path (single time block).
    N, T, V = 2, 9, 128
    raw = jax.random.normal(k1, (N, T, V), dtype=jnp.float32)
    logits = jax.nn.log_softmax(raw, axis=-1)
    targets = jax.random.randint(k2, (N, T), 0, V, dtype=jnp.int32)
    masks = (jax.random.uniform(k3, (N, T)) > 0.3).astype(jnp.float32)

    out = jax.block_until_ready(language_model_criterion(logits, targets, masks))
    ref = _reference(logits, targets, masks)
    assert jnp.allclose(out, ref, rtol=1e-4, atol=1e-5), (out, ref)

    # Test 2: N=1, bf16 logits, forced small time tile -> exercises the
    # parallel outer-time split, block-index clamping, edge padding and the
    # native-dtype (packed bf16) gather path.
    N2, T2, V2 = 1, 37, 256
    raw2 = jax.random.normal(k4, (N2, T2, V2), dtype=jnp.float32)
    logits2 = jax.nn.log_softmax(raw2, axis=-1).astype(jnp.bfloat16)
    targets2 = jax.random.randint(k5, (N2, T2), 0, V2, dtype=jnp.int32)
    masks2 = (jax.random.uniform(k6, (N2, T2)) > 0.3).astype(jnp.float32)

    out2 = jax.block_until_ready(
        language_model_criterion(logits2, targets2, masks2, tile_time=16))
    ref2 = _reference(logits2, targets2, masks2)
    assert jnp.allclose(out2, ref2, rtol=1e-4, atol=1e-4), (out2, ref2)

    print("KERNEL_OK")
</pallas_src>

<mosaic_0001>
module attributes {stable_mosaic.version = 11 : i64} {
  func.func @_nll_kernel(%arg0: i32, %arg1: i32, %arg2: i32, %arg3: memref<1x8x128xf32, #tpu.memory_space<vmem>>, %arg4: memref<8x2xf32, #tpu.memory_space<vmem>>, %arg5: memref<1x1x8x128xf32, #tpu.memory_space<vmem>>) attributes {dimension_semantics = [#tpu.dimension_semantics<parallel>, #tpu.dimension_semantics<parallel>, #tpu.dimension_semantics<arbitrary>], iteration_bounds = array<i64: 2, 1, 1>, scalar_prefetch = 0 : i64, scratch_operands = 0 : i64, tpu.core_type = #tpu.core_type<tc>, window_params = [{transform_indices = @transform_0, window_bounds = array<i64: 1, 8, 128>}, {transform_indices = @transform_1, window_bounds = array<i64: 8, 2>}, {transform_indices = @transform_2, window_bounds = array<i64: 1, 1, 8, 128>}]} {
    %c0_i32 = arith.constant 0 : i32
    %0 = arith.cmpi eq, %arg2, %c0_i32 : i32
    %1 = arith.extui %0 : i1 to i32
    %c0_i32_0 = arith.constant 0 : i32
    %2 = arith.cmpi ne, %1, %c0_i32_0 : i32
    scf.if %2 {
      %cst_17 = arith.constant 0.000000e+00 : f32
      %29 = vector.broadcast %cst_17 : f32 to vector<1x1x8x128xf32>
      %c0_18 = arith.constant 0 : index
      %c0_19 = arith.constant 0 : index
      %c0_20 = arith.constant 0 : index
      %c0_21 = arith.constant 0 : index
      %30 = vector.load %arg5[%c0_18, %c0_19, %c0_20, %c0_21] : memref<1x1x8x128xf32, #tpu.memory_space<vmem>>, vector<1x1x8x128xf32>
      tpu.vector_store %arg5[%c0_18, %c0_19, %c0_20, %c0_21], %29 {strides = array<i32>} : memref<1x1x8x128xf32, #tpu.memory_space<vmem>>, vector<1x1x8x128xf32>,
    } else {
    }
    %c0 = arith.constant 0 : index
    %c0_1 = arith.constant 0 : index
    %c0_2 = arith.constant 0 : index
    %3 = vector.load %arg3[%c0, %c0_1, %c0_2] : memref<1x8x128xf32, #tpu.memory_space<vmem>>, vector<1x8x128xf32>
    %4 = vector.shape_cast %3 : vector<1x8x128xf32> to vector<8x128xf32>
    %c0_3 = arith.constant 0 : index
    %c0_4 = arith.constant 0 : index
    %5 = vector.load %arg4[%c0_3, %c0_4] : memref<8x2xf32, #tpu.memory_space<vmem>>, vector<8x2xf32>
    %6 = vector.extract_strided_slice %5 {offsets = [0, 0], sizes = [8, 1], strides = [1, 1]} : vector<8x2xf32> to vector<8x1xf32>
    %7 = arith.fptosi %6 : vector<8x1xf32> to vector<8x1xi32>
    %8 = vector.extract_strided_slice %5 {offsets = [0, 1], sizes = [8, 1], strides = [1, 1]} : vector<8x2xf32> to vector<8x1xf32>
    %9 = tpu.iota {dimensions = array<i32: 1>} : vector<8x128xi32>
    %10 = vector.broadcast %7 : vector<8x1xi32> to vector<8x128xi32>
    %11 = arith.cmpi eq, %9, %10 : vector<8x128xi32>
    %cst = arith.constant 0.000000e+00 : f32
    %12 = vector.broadcast %cst : f32 to vector<8x128xf32>
    %13 = arith.select %11, %4, %12 : vector<8x128xi1>, vector<8x128xf32>
    %cst_5 = arith.constant dense<0.000000e+00> : vector<8xf32>
    %14 = vector.multi_reduction <add>, %13, %cst_5 [1] : vector<8x128xf32> to vector<8xf32>
    %15 = vector.shape_cast %14 : vector<8xf32> to vector<8x1xf32>
    %cst_6 = arith.constant 0.000000e+00 : f32
    %16 = vector.broadcast %cst_6 : f32 to vector<8x1xf32>
    %17 = arith.cmpf one, %8, %16 : vector<8x1xf32>
    %18 = arith.mulf %15, %8 : vector<8x1xf32>
    %cst_7 = arith.constant 0.000000e+00 : f32
    %19 = vector.broadcast %cst_7 : f32 to vector<8x1xf32>
    %20 = arith.select %17, %18, %19 : vector<8x1xi1>, vector<8x1xf32>
    %c0_8 = arith.constant 0 : index
    %c0_9 = arith.constant 0 : index
    %c0_10 = arith.constant 0 : index
    %c0_11 = arith.constant 0 : index
    %21 = vector.load %arg5[%c0_8, %c0_9, %c0_10, %c0_11] : memref<1x1x8x128xf32, #tpu.memory_space<vmem>>, vector<1x1x8x128xf32>
    %22 = vector.shape_cast %20 : vector<8x1xf32> to vector<1x8x1xf32>
    %cst_12 = arith.constant dense<0.000000e+00> : vector<1xf32>
    %23 = vector.multi_reduction <add>, %22, %cst_12 [1, 2] : vector<1x8x1xf32> to vector<1xf32>
    %24 = vector.shape_cast %23 : vector<1xf32> to vector<1x1x1xf32>
    %25 = vector.extract %24[0, 0, 0] : f32 from vector<1x1x1xf32>
    %26 = vector.broadcast %25 : f32 to vector<1x1x8x128xf32>
    %27 = arith.addf %21, %26 : vector<1x1x8x128xf32>
    %c0_13 = arith.constant 0 : index
    %c0_14 = arith.constant 0 : index
    %c0_15 = arith.constant 0 : index
    %c0_16 = arith.constant 0 : index
    %28 = vector.load %arg5[%c0_13, %c0_14, %c0_15, %c0_16] : memref<1x1x8x128xf32, #tpu.memory_space<vmem>>, vector<1x1x8x128xf32>
    tpu.vector_store %arg5[%c0_13, %c0_14, %c0_15, %c0_16], %27 {strides = array<i32>} : memref<1x1x8x128xf32, #tpu.memory_space<vmem>>, vector<1x1x8x128xf32>,
    return
  }
  func.func @transform_0(%arg0: i32, %arg1: i32, %arg2: i32) -> (i32, i32, i32) {
    %c1_i32 = arith.constant 1 : i32
    %0 = arith.muli %arg1, %c1_i32 : i32
    %1 = arith.addi %0, %arg2 : i32
    %c0_i32 = arith.constant 0 : i32
    %2 = arith.minsi %1, %c0_i32 : i32
    %c0_i32_0 = arith.constant 0 : i32
    %c0_i32_1 = arith.constant 0 : i32
    return %arg0, %2, %c0_i32_0 : i32, i32, i32
  }
  func.func @transform_1(%arg0: i32, %arg1: i32, %arg2: i32) -> (i32, i32) {
    %c1_i32 = arith.constant 1 : i32
    %0 = arith.muli %arg0, %c1_i32 : i32
    %c1_i32_0 = arith.constant 1 : i32
    %1 = arith.muli %arg1, %c1_i32_0 : i32
    %2 = arith.addi %0, %1 : i32
    %3 = arith.addi %2, %arg2 : i32
    %c0_i32 = arith.constant 0 : i32
    %c0_i32_1 = arith.constant 0 : i32
    return %3, %c0_i32 : i32, i32
  }
  func.func @transform_2(%arg0: i32, %arg1: i32, %arg2: i32) -> (i32, i32, i32, i32) {
    %c0_i32 = arith.constant 0 : i32
    %c0_i32_0 = arith.constant 0 : i32
    %c0_i32_1 = arith.constant 0 : i32
    return %arg0, %arg1, %c0_i32, %c0_i32_0 : i32, i32, i32, i32
  }
}

</mosaic_0001>

<llo_original>
// kernel: tpu_custom_call.1
$region0: #{tpu_custom_call.1}
  #allocation0 [shape = 'u32[]', space=smem, size = 0x4, offset = 0x4, fixed_abs, tag = 'smem constant byte address 0x4 - core index']
  #allocation1 [shape = 'u32[144,128]{1,0:T(1,128)}', space=vmem, size = 0x12000, scoped, tag = 'internal scratch']
  %s0 = inlined_call_operand.hbm [shape: f32[2,9,128], index: 0, kind: input, shape index: {}]
  %s1 = inlined_call_operand.hbm [shape: f32[16,2], index: 1, kind: input, shape index: {}]
  %s2 = inlined_call_operand.hbm [shape: f32[2,1,8,128], index: 2, kind: output, shape index: {}]
  %s3 = sld [smem:[#allocation0]]
  $region53: #{tpu_custom_call.1} parent=0
    _
  %s5 = ssub.s32 1, %s3
  %s6 = scalar_select 0, %s5, %s3
  $region1: #{tpu_custom_call.1} parent=0
    #allocation2 [shape = 'u8[8192]{0}', space=vmem, size = 0x2000, scoped, tag = 'input window, operand 0']
    #allocation3 [shape = 's32[2]{0}', space=sflag, size = 0x8, scoped, tag = 'scoped memory for tpu_custom_call.1']
    #allocation4 [shape = 's32[2]{0}', space=sflag, size = 0x8, scoped, tag = 'scoped memory for tpu_custom_call.1']
    #allocation5 [shape = 'u8[8192]{0}', space=vmem, size = 0x2000, scoped, tag = 'input window, operand 1']
    #allocation6 [shape = 's32[2]{0}', space=sflag, size = 0x8, scoped, tag = 'scoped memory for tpu_custom_call.1']
    #allocation7 [shape = 'u8[8192]{0}', space=vmem, size = 0x2000, scoped, tag = 'output window, operand 0']
    %7 = vsyncpa [#allocation3], 0
    %s8 = scalar_lea.sflag [#allocation3], 1
    %9 = vsyncpa %s8, 0
    %10 = vsyncpa [#allocation6], 0
    %s11 = scalar_lea.sflag [#allocation6], 1
    %12 = vsyncpa %s11, 0
    %13 = vsyncpa [#allocation4], 0
    %s14 = scalar_lea.sflag [#allocation4], 1
    %15 = vsyncpa %s14, 0
    loop: start=0, step=1, limit=4
    $region2: #{tpu_custom_call.1} parent=1 // loop_pre_header
      _
    $region3: #{tpu_custom_call.1} parent=1 // loop_header
      %s17 = sphi 0, %s21
      %p18 = scmp.ge.s32.totalorder %s17, 4
      %s24 = sphi 0, %s43
      %s25 = sphi 0, %s39
      %s26 = sphi 0, %s35
      %s27 = sphi 0, %s24
      %s28 = sphi 0, %s25
      %s29 = sphi 0, %s26
      %s30 = sphi 0, %s27
      %s31 = sphi 0, %s28
      %s32 = sphi 0, %s29
      %s54 = sphi 0, %s56
      %s57 = sphi 0, %s54
      %s58 = sphi 0, %s57
      %s74 = sphi 0, %s58
      %s84 = sphi 0, %s86
      %s87 = sphi 0, %s84
      %s88 = sphi 0, %s87
      %s104 = sphi 0, %s88
      %s112 = sphi 0, %s114
      %s115 = sphi 0, %s112
      %s116 = sphi 0, %s115
      %s132 = sphi 0, %s116
    $region4: #{tpu_custom_call.1} parent=1 // loop_header_branch
      %20 = sbr.rel (%p18) target = $region8
    $region5: #{tpu_custom_call.1} parent=1 // loop_body
      %s22 = ssub.s32 %s17, 1
      %s23 = ssub.s32 %s17, 2
      %s33 = sadd.s32 1, %s26
      %p34 = scmp.ge.s32.totalorder %s33, 1
      %s35 = scalar_select %p34, 0, %s33
      %s36 = sadd.s32 1, %s25
      %s37 = scalar_select %p34, %s36, %s25
      %p38 = scmp.ge.s32.totalorder %s37, 1
      %s39 = scalar_select %p38, 0, %s37
      %s40 = sadd.s32 1, %s24
      %s41 = scalar_select %p38, %s40, %s24
      %p42 = scmp.ge.s32.totalorder %s41, 2
      %s43 = scalar_select %p42, 0, %s41
      %s44 = sadd.s32 %s25, %s26
      %p45 = scmp.lt.s32.totalorder %s44, 0
      %s46 = scalar_select %p45, %s44, 0
      %s47 = sadd.s32 %s39, %s35
      %p48 = scmp.lt.s32.totalorder %s47, 0
      %s49 = scalar_select %p48, %s47, 0
      %s50 = ssub.s32 %s24, %s43
      %s51 = ssub.s32 %s46, %s49
      %s52 = sor.u32 %s50, %s51
      %p53 = scmp.eq.s32.totalorder %s52, 0
      %s55 = sadd.s32 %s54, 1
      %s56 = scalar_select %p53, %s54, %s55
      %p59 = pneg %p53
      %p60 = scmp.eq.s32.totalorder %s17, 1
      %p61 = por %p59, %p60
      %p62 = scmp.ne.s32.totalorder %s54, %s57
      %p63 = scmp.eq.s32.totalorder %s17, 0
      %p64 = por %p62, %p63
      %p65 = scmp.ne.s32.totalorder %s54, %s57
      %p66 = scmp.eq.s32.totalorder %s22, 1
      %p67 = por %p65, %p66
      %p68 = scmp.ne.s32.totalorder %s57, %s58
      %p69 = scmp.eq.s32.totalorder %s22, 0
      %p70 = por %p68, %p69
      %p71 = scmp.ne.s32.totalorder %s57, %s58
      %p72 = scmp.eq.s32.totalorder %s23, 1
      %p73 = por %p71, %p72
      %p75 = scmp.ne.s32.totalorder %s58, %s74
      %p76 = scmp.eq.s32.totalorder %s23, 0
      %p77 = por %p75, %p76
      %s78 = sadd.s32 %s24, %s25
      %s79 = sadd.s32 %s78, %s26
      %s80 = sadd.s32 %s43, %s39
      %s81 = sadd.s32 %s80, %s35
      %s82 = ssub.s32 %s79, %s81
      %p83 = scmp.eq.s32.totalorder %s82, 0
      %s85 = sadd.s32 %s84, 1
      %s86 = scalar_select %p83, %s84, %s85
      %p89 = pneg %p83
      %p90 = scmp.eq.s32.totalorder %s17, 1
      %p91 = por %p89, %p90
      %p92 = scmp.ne.s32.totalorder %s84, %s87
      %p93 = scmp.eq.s32.totalorder %s17, 0
      %p94 = por %p92, %p93
      %p95 = scmp.ne.s32.totalorder %s84, %s87
      %p96 = scmp.eq.s32.totalorder %s22, 1
      %p97 = por %p95, %p96
      %p98 = scmp.ne.s32.totalorder %s87, %s88
      %p99 = scmp.eq.s32.totalorder %s22, 0
      %p100 = por %p98, %p99
      %p101 = scmp.ne.s32.totalorder %s87, %s88
      %p102 = scmp.eq.s32.totalorder %s23, 1
      %p103 = por %p101, %p102
      %p105 = scmp.ne.s32.totalorder %s88, %s104
      %p106 = scmp.eq.s32.totalorder %s23, 0
      %p107 = por %p105, %p106
      %s108 = ssub.s32 %s24, %s43
      %s109 = ssub.s32 %s25, %s39
      %s110 = sor.u32 %s108, %s109
      %p111 = scmp.eq.s32.totalorder %s110, 0
      %s113 = sadd.s32 %s112, 1
      %s114 = scalar_select %p111, %s112, %s113
      %p117 = pneg %p111
      %p118 = scmp.eq.s32.totalorder %s17, 1
      %p119 = por %p117, %p118
      %p120 = scmp.ne.s32.totalorder %s112, %s115
      %p121 = scmp.eq.s32.totalorder %s17, 0
      %p122 = por %p120, %p121
      %p123 = scmp.ne.s32.totalorder %s112, %s115
      %p124 = scmp.eq.s32.totalorder %s22, 1
      %p125 = por %p123, %p124
      %p126 = scmp.ne.s32.totalorder %s115, %s116
      %p127 = scmp.eq.s32.totalorder %s22, 0
      %p128 = por %p126, %p127
      %p129 = scmp.ne.s32.totalorder %s115, %s116
      %p130 = scmp.eq.s32.totalorder %s23, 1
      %p131 = por %p129, %p130
      %p133 = scmp.ne.s32.totalorder %s116, %s132
      %p134 = scmp.eq.s32.totalorder %s23, 0
      %p135 = por %p133, %p134
      %p136 = scmp.le.s32.totalorder 1, %s17
      %p137 = scmp.lt.s32.totalorder %s17, 3
      %p138 = pnand %p136, %p137
      %p139 = pneg %p138
      // Predicated region
      $region9: #{tpu_custom_call.1} parent=5 // pred_check
        _
      $region10: #{tpu_custom_call.1} parent=5 // pred_check_branch
        %141 = sbr.rel (%p138) target = $region12
      $region11: #{tpu_custom_call.1} parent=5 // pred_region
        %s142 = ssub.s32 %s17, 1
      $region12: #{tpu_custom_call.1} parent=5 // pred_fallthru
        _
      %p143 = scmp.lt.s32.totalorder %s17, 2
      // Predicated region
      $region13: #{tpu_custom_call.1} parent=5 // pred_check
        %p144 = pneg %p143
      $region14: #{tpu_custom_call.1} parent=5 // pred_check_branch
        %146 = sbr.rel (%p144) target = $region16
      $region15: #{tpu_custom_call.1} parent=5 // pred_region
        // Predicated region
        $region17: #{tpu_custom_call.1} parent=15 // pred_check
          %p147 = pneg %p64
        $region18: #{tpu_custom_call.1} parent=15 // pred_check_branch
          %149 = sbr.rel (%p147) target = $region20
        $region19: #{tpu_custom_call.1} parent=15 // pred_region
          %s150 = sand.u32 %s54, 1
          %s151 = scalar_lea.sflag [#allocation3], %s150
          %s152 = sand.u32 %s54, 1
          %s153 = smul.addr %s152, 8
          %s154 = scalar_lea.vmem [#allocation2], %s153
          %s155 = sadd.s32 %s25, %s26
          %p156 = scmp.lt.s32.totalorder %s155, 0
          %s157 = scalar_select %p156, %s155, 0
          %s159 = ssub.s32 128, 128
          %160 = vsyncadd %s151, %s159
          %s161 = smul.addr %s24, 2
          %s162 = sadd.s32 %s157, %s161
          %s163 = smul.addr %s162, 128
          %s164 = scalar_lea.hbm %s0, %s163
          %s166 = sshll.u32 %s154, 4
          %s167 = int_to_ptr.vmem [resolvable:$true] %s166
          %169 = dma.hbm_to_vmem [thread:$0]  %s164, 128, %s167, %s151
        $region20: #{tpu_custom_call.1} parent=15 // pred_fallthru
          _
        // Predicated region
        $region21: #{tpu_custom_call.1} parent=15 // pred_check
          %p170 = pneg %p94
        $region22: #{tpu_custom_call.1} parent=15 // pred_check_branch
          %172 = sbr.rel (%p170) target = $region24
        $region23: #{tpu_custom_call.1} parent=15 // pred_region
          %s173 = sand.u32 %s84, 1
          %s174 = scalar_lea.sflag [#allocation6], %s173
          %s175 = sand.u32 %s84, 1
          %s176 = smul.addr %s175, 8
          %s177 = scalar_lea.vmem [#allocation5], %s176
          %s178 = sadd.s32 %s24, %s25
          %s179 = sadd.s32 %s178, %s26
          %s181 = ssub.s32 128, 128
          %182 = vsyncadd %s174, %s181
          %s183 = smul.addr %s179, 128
          %s184 = scalar_lea.hbm %s1, %s183
          %s186 = sshll.u32 %s177, 4
          %s187 = int_to_ptr.vmem [resolvable:$true] %s186
          %189 = dma.hbm_to_vmem [thread:$0]  %s184, 128, %s187, %s174
        $region24: #{tpu_custom_call.1} parent=15 // pred_fallthru
          _
      $region16: #{tpu_custom_call.1} parent=5 // pred_fallthru
        _
      %p190 = scmp.le.s32.totalorder 1, %s17
      %p191 = scmp.lt.s32.totalorder %s17, 3
      %p192 = pnand %p190, %p191
      %p193 = pneg %p192
      // Predicated region
      $region25: #{tpu_custom_call.1} parent=5 // pred_check
        _
      $region26: #{tpu_custom_call.1} parent=5 // pred_check_branch
        %195 = sbr.rel (%p192) target = $region28
      $region27: #{tpu_custom_call.1} parent=5 // pred_region
        %s196 = ssub.s32 %s17, 1
        %s197 = sand.u32 %s57, 1
        %s198 = scalar_lea.sflag [#allocation3], %s197
        %s199 = sand.u32 %s57, 1
        %s200 = smul.addr %s199, 8
        %s201 = scalar_lea.vmem [#allocation2], %s200
        // Predicated region
        $region29: #{tpu_custom_call.1} parent=27 // pred_check
          %p202 = pneg %p70
        $region30: #{tpu_custom_call.1} parent=27 // pred_check_branch
          %204 = sbr.rel (%p202) target = $region32
        $region31: #{tpu_custom_call.1} parent=27 // pred_region
          %205 = dma.done %s198, 128
        $region32: #{tpu_custom_call.1} parent=27 // pred_fallthru
          _
        %s206 = sand.u32 %s87, 1
        %s207 = scalar_lea.sflag [#allocation6], %s206
        %s208 = sand.u32 %s87, 1
        %s209 = smul.addr %s208, 8
        %s210 = scalar_lea.vmem [#allocation5], %s209
        // Predicated region
        $region33: #{tpu_custom_call.1} parent=27 // pred_check
          %p211 = pneg %p100
        $region34: #{tpu_custom_call.1} parent=27 // pred_check_branch
          %213 = sbr.rel (%p211) target = $region36
        $region35: #{tpu_custom_call.1} parent=27 // pred_region
          %214 = dma.done %s207, 128
        $region36: #{tpu_custom_call.1} parent=27 // pred_fallthru
          _
        %s215 = sand.u32 %s57, 1
        %s216 = scalar_lea.sflag [#allocation3], %s215
        %s217 = sand.u32 %s57, 1
        %s218 = smul.addr %s217, 8
        %s219 = scalar_lea.vmem [#allocation2], %s218
        %p220 = pneg %p70
        %p221 = pneg %p67
        %s222 = sand.u32 %s87, 1
        %s223 = scalar_lea.sflag [#allocation6], %s222
        %s224 = sand.u32 %s87, 1
        %s225 = smul.addr %s224, 8
        %s226 = scalar_lea.vmem [#allocation5], %s225
        %p227 = pneg %p100
        %p228 = pneg %p97
        %p229 = pneg %p128
        %p230 = pneg %p125
        %s231 = sand.u32 %s115, 1
        %s232 = scalar_lea.sflag [#allocation4], %s231
        %s233 = sand.u32 %s115, 1
        %s234 = smul.addr %s233, 8
        %s235 = scalar_lea.vmem [#allocation7], %s234
        %s236 = sadd.s32 %s28, %s29
        %p237 = scmp.lt.s32.totalorder %s236, 0
        %s238 = scalar_select %p237, %s236, 0
        %s239 = sadd.s32 %s27, %s28
        %s240 = sadd.s32 %s239, %s29
        %p241 = scmp.eq.s32.totalorder %s29, 0
        // Predicated region
        $region37: #{tpu_custom_call.1} parent=27 // pred_check
          %p242 = pneg %p241
        $region38: #{tpu_custom_call.1} parent=27 // pred_check_branch
          %244 = sbr.rel (%p242) target = $region40
        $region39: #{tpu_custom_call.1} parent=27 // pred_region
          %245 = vst [vmem:[%s235] sm:$0xff] 0.0
        $region40: #{tpu_custom_call.1} parent=27 // pred_fallthru
          _
        %v246 = vld [vmem:[%s201] sm:$0xff]
        %v247 = vld [vmem:[%s210] sm:$0xff]
        %v248 = vcvt.f32.s32.to.zero.pseudo %v247
        %v249 = vlaneseq
        %v250 = vand.u32 %v249, 127
        %251 = vset.pattern.permute.xlu0 0
        %252 = vperm.xlu0 %251, %v248
        %v253 = vpop.permute.xlu0 %252
        %vm254 = vcmp.eq.s32.totalorder %v250, %v253
        %v255 = vsel %vm254, %v246, 0.0
        %256 = vadd.xlane.f32.xlu0 %v255
        %v257 = vpop.xlane.xlu0 %256
        %vm258 = vcmp.ne.f32.partialorder %v247, 0.0
        %v259 = vmul.f32 %v257, %v247
        %v260 = vsel %vm258, %v259, 0.0
        %v261 = vld [vmem:[%s235] sm:$0xff]
        %263 = vrot.lane.b32.xlu0 %v260, 127
        %v264 = vpop.permute.xlu0 %263
        %vm266 = vcmask 7168
        %v267 = vsel %vm266, %v264, 0.0
        %268 = vadd.xlane.f32.xlu0 %v267
        %v269 = vpop.xlane.xlu0 %268
        %v270 = vrot.slane %v269, 4
        %v271 = vadd.f32 %v269, %v270
        %v272 = vrot.slane %v271, 2
        %v273 = vadd.f32 %v271, %v272
        %v274 = vrot.slane %v273, 1
        %v275 = vadd.f32 %v273, %v274
        %s276 = vtos %v275
        %v277 = vstv %s276
        %v278 = vadd.f32 %v261, %v277
        %279 = vst [vmem:[%s235] sm:$0xff] %v278
        %s280 = sand.u32 %s115, 1
        %s281 = scalar_lea.sflag [#allocation4], %s280
        %s282 = sand.u32 %s115, 1
        %s283 = smul.addr %s282, 8
        %s284 = scalar_lea.vmem [#allocation7], %s283
        // Predicated region
        $region41: #{tpu_custom_call.1} parent=27 // pred_check
          %p285 = pneg %p125
        $region42: #{tpu_custom_call.1} parent=27 // pred_check_branch
          %287 = sbr.rel (%p285) target = $region44
        $region43: #{tpu_custom_call.1} parent=27 // pred_region
          %s289 = ssub.s32 128, 128
          %290 = vsyncadd %s281, %s289
          %s291 = sadd.s32 %s28, %s27
          %s292 = smul.addr %s291, 128
          %s293 = scalar_lea.hbm %s2, %s292
          %s295 = sshll.u32 %s284, 4
          %s296 = int_to_ptr.vmem [resolvable:$true] %s295
          %298 = dma.vmem_to_hbm [thread:$0]  %s296, 128, %s293, %s281
        $region44: #{tpu_custom_call.1} parent=27 // pred_fallthru
          _
      $region28: #{tpu_custom_call.1} parent=5 // pred_fallthru
        _
      %p299 = scmp.le.s32.totalorder 2, %s17
      // Predicated region
      $region45: #{tpu_custom_call.1} parent=5 // pred_check
        %p300 = pneg %p299
      $region46: #{tpu_custom_call.1} parent=5 // pred_check_branch
        %302 = sbr.rel (%p300) target = $region48
      $region47: #{tpu_custom_call.1} parent=5 // pred_region
        %s303 = ssub.s32 %s17, 2
        // Predicated region
        $region49: #{tpu_custom_call.1} parent=47 // pred_check
          %p304 = pneg %p131
        $region50: #{tpu_custom_call.1} parent=47 // pred_check_branch
          %306 = sbr.rel (%p304) target = $region52
        $region51: #{tpu_custom_call.1} parent=47 // pred_region
          %s307 = sand.u32 %s116, 1
          %s308 = scalar_lea.sflag [#allocation4], %s307
          %s309 = sand.u32 %s116, 1
          %s310 = smul.addr %s309, 8
          %s311 = scalar_lea.vmem [#allocation7], %s310
          %312 = dma.done %s308, 128
        $region52: #{tpu_custom_call.1} parent=47 // pred_fallthru
          _
      $region48: #{tpu_custom_call.1} parent=5 // pred_fallthru
        _
    $region6: #{tpu_custom_call.1} parent=1 // loop_footer
      %s21 = sadd.s32 1, %s17
    $region7: #{tpu_custom_call.1} parent=1 // loop_footer_branch
      %16 = sbr.rel target = $region3
    $region8: #{tpu_custom_call.1} parent=1 // loop_exit
      _
    %313 = vsyncpa [#allocation3], 1
    %s314 = scalar_lea.sflag [#allocation3], 1
    %315 = vsyncpa %s314, 1
    %316 = vsyncpa [#allocation6], 1
    %s317 = scalar_lea.sflag [#allocation6], 1
    %318 = vsyncpa %s317, 1
    %319 = vsyncpa [#allocation4], 1
    %s320 = scalar_lea.sflag [#allocation4], 1
    %321 = vsyncpa %s320, 1

</llo_original>
